<compile_context>
chip_gen: v6e
topology: v6e:2x2x1
jax: 0.10.0
libtpu: 0.0.40
codegen_flags: <defaults>
</compile_context>

<pallas_src>
import math

import jax
import jax.numpy as jnp
from jax.experimental import pallas as pl
from jax.experimental.pallas import tpu as pltpu


def _copy_kernel(x_ref, o_ref):
    # Pass-through: the abstract Decoder defines no transformation of X.
    o_ref[...] = x_ref[...]


_LANES = 128
# Per-buffer tile budget: 6 MiB -> ~24 MiB total pipeline (2 in + 2 out
# double-buffers), safe under v7x's 64 MiB VMEM and near HBM roofline on all
# generations (per-step 0.35 us overhead becomes negligible at this size).
_PER_BUFFER_TILE_BYTES = 6 * 1024 * 1024
# Explicit scoped-VMEM limit: raises v5e's 16 MiB default, leaves headroom
# under v7x's 64 MiB physical VMEM.
_VMEM_LIMIT_BYTES = 48 * 1024 * 1024
# Below this size a single whole-array block is cheapest (no pipelining win).
_SMALL_ARRAY_BYTES = 512 * 1024


def _sublane_gran(itemsize: int) -> int:
    if itemsize >= 4:
        return 8       # f32 sublane granularity
    if itemsize == 2:
        return 16      # bf16 packs 2 rows / sublane
    return 32          # int8 / fp8


def _row_tile(rows: int, itemsize: int) -> int:
    """Sublane-aligned row tile; large enough to hide per-step overhead,
    small enough for v7x VMEM, and split so the grid has >= 2 blocks."""
    gran = _sublane_gran(itemsize)
    total_bytes = rows * _LANES * itemsize
    if total_bytes <= _SMALL_ARRAY_BYTES or rows < 2 * gran:
        return rows    # whole-array single block (block_shape == array shape)
    tm = (_PER_BUFFER_TILE_BYTES // (_LANES * itemsize)) // gran * gran
    tm = max(gran, tm)
    if tm >= rows:
        # Array fits in one big tile: split into 2 blocks anyway so the
        # ("parallel",) axis shards work across both TensorCores on v7x.
        half = (rows + 1) // 2
        tm = max(gran, ((half + gran - 1) // gran) * gran)
        if tm >= rows:
            tm = rows
    return tm


def _pallas_identity(x: jax.Array) -> jax.Array:
    """Lane-dense, row-tiled Pallas copy of x (exact identity)."""
    orig_shape = x.shape
    total = math.prod(orig_shape) if orig_shape else 1
    itemsize = jnp.dtype(x.dtype).itemsize

    # Lane-dense presentation: pad flattened array to a multiple of 128 so the
    # last dim is always 128 lanes (full-occupancy vst, never masked stores).
    pad = (-total) % _LANES
    flat = x.reshape(total)
    if pad:
        flat = jnp.pad(flat, (0, pad))
    rows = (total + pad) // _LANES
    x2d = flat.reshape(rows, _LANES)

    tm = _row_tile(rows, itemsize)
    grid = (pl.cdiv(rows, tm),)

    y2d = pl.pallas_call(
        _copy_kernel,
        out_shape=jax.ShapeDtypeStruct((rows, _LANES), x.dtype),
        grid=grid,
        in_specs=[pl.BlockSpec((tm, _LANES), lambda i: (i, 0))],
        out_specs=pl.BlockSpec((tm, _LANES), lambda i: (i, 0)),
        compiler_params=pltpu.CompilerParams(
            dimension_semantics=("parallel",),     # 2-TC sharding on v7x
            vmem_limit_bytes=_VMEM_LIMIT_BYTES,
        ),
        cost_estimate=pl.CostEstimate(
            flops=0,
            transcendentals=0,
            bytes_accessed=2 * total * itemsize,
        ),
    )(x2d)

    return y2d.reshape(-1)[:total].reshape(orig_shape)


def decoder_forward(x: jax.Array, state, *, force_pallas_copy: bool = False):
    """Pallas-backed stand-in for Decoder.forward(X, state).

    Identity on X (the reference forward is abstract), state passed through.
    Default path returns x directly (zero HBM traffic, per perf review);
    `force_pallas_copy=True` runs the tuned Pallas copy kernel instead.
    """
    if not force_pallas_copy:
        # Fast path: no math is defined, so launching a kernel would only add
        # a redundant HBM read + writeback.
        return x, state
    return _pallas_identity(x), state


def decoder_init_state(enc_outputs, *args):
    # TODO(synk): abstract in the reference module (NotImplementedError);
    # pass the encoder outputs through as the state.
    return enc_outputs


if __name__ == "__main__":
    key = jax.random.PRNGKey(0)
    kx, ke, ko = jax.random.split(key, 3)

    B, S, H = 2, 8, 32  # small shapes consistent with a seq2seq decoder input
    x = jax.random.normal(kx, (B, S, H), dtype=jnp.float32)
    enc_outputs = jax.random.normal(ke, (B, S, H), dtype=jnp.float32)

    state = decoder_init_state(enc_outputs)

    # Default (recommended) path: no kernel launch, exact identity.
    y_fast, st_fast = decoder_forward(x, state)
    jax.block_until_ready(y_fast)

    # Materializing path: exercises the tuned Pallas copy kernel.
    y_pallas, st_pallas = decoder_forward(x, state, force_pallas_copy=True)
    jax.block_until_ready(y_pallas)
    jax.block_until_ready(st_pallas)

    # Non-multiple-of-128 element count: exercises the padded lane-dense path.
    x_odd = jax.random.normal(ko, (2, 8, 30), dtype=jnp.float32)
    y_odd, _ = decoder_forward(x_odd, state, force_pallas_copy=True)
    jax.block_until_ready(y_odd)

    # Identity semantics checks (the only concrete behavior we can assert).
    assert y_fast.shape == x.shape and y_fast.dtype == x.dtype
    assert bool(jnp.allclose(y_fast, x))
    assert y_pallas.shape == x.shape and y_pallas.dtype == x.dtype
    assert bool(jnp.allclose(y_pallas, x))
    assert y_odd.shape == x_odd.shape and bool(jnp.allclose(y_odd, x_odd))
    assert bool(jnp.allclose(st_pallas, enc_outputs))

    print("KERNEL_OK")
</pallas_src>

<mosaic_0001>
module attributes {stable_mosaic.version = 11 : i64} {
  func.func @_copy_kernel(%arg0: i32, %arg1: memref<4x128xf32, #tpu.memory_space<vmem>>, %arg2: memref<4x128xf32, #tpu.memory_space<vmem>>) attributes {dimension_semantics = [#tpu.dimension_semantics<parallel>], iteration_bounds = array<i64: 1>, scalar_prefetch = 0 : i64, scratch_operands = 0 : i64, tpu.core_type = #tpu.core_type<tc>, window_params = [{transform_indices = @transform_0, window_bounds = array<i64: 4, 128>}, {transform_indices = @transform_1, window_bounds = array<i64: 4, 128>}]} {
    %c0 = arith.constant 0 : index
    %c0_0 = arith.constant 0 : index
    %0 = vector.load %arg1[%c0, %c0_0] : memref<4x128xf32, #tpu.memory_space<vmem>>, vector<4x128xf32>
    %c0_1 = arith.constant 0 : index
    %c0_2 = arith.constant 0 : index
    %1 = vector.load %arg2[%c0_1, %c0_2] : memref<4x128xf32, #tpu.memory_space<vmem>>, vector<4x128xf32>
    tpu.vector_store %arg2[%c0_1, %c0_2], %0 {strides = array<i32>} : memref<4x128xf32, #tpu.memory_space<vmem>>, vector<4x128xf32>,
    return
  }
  func.func @transform_0(%arg0: i32) -> (i32, i32) {
    %c0_i32 = arith.constant 0 : i32
    %c0_i32_0 = arith.constant 0 : i32
    return %arg0, %c0_i32 : i32, i32
  }
  func.func @transform_1(%arg0: i32) -> (i32, i32) {
    %c0_i32 = arith.constant 0 : i32
    %c0_i32_0 = arith.constant 0 : i32
    return %arg0, %c0_i32 : i32, i32
  }
}

</mosaic_0001>

<llo_original>
// kernel: tpu_custom_call.1
$region0: #{tpu_custom_call.1}
  #allocation0 [shape = 'u32[]', space=smem, size = 0x4, offset = 0x4, fixed_abs, tag = 'smem constant byte address 0x4 - core index']
  #allocation1 [shape = 'u32[144,128]{1,0:T(1,128)}', space=vmem, size = 0x12000, scoped, tag = 'internal scratch']
  %s0 = inlined_call_operand.hbm [shape: f32[4,128], index: 0, kind: input, shape index: {}]
  %s1 = inlined_call_operand.hbm [shape: f32[4,128], index: 1, kind: output, shape index: {}]
  %s2 = sld [smem:[#allocation0]]
  $region18: #{tpu_custom_call.1} parent=0
    _
  %s4 = ssub.s32 1, %s2
  %s5 = scalar_select 0, %s4, %s2
  $region1: #{tpu_custom_call.1} parent=0
    #allocation2 [shape = 'u8[2048]{0}', space=vmem, size = 0x800, scoped, tag = 'input window, operand 0, single buffered']
    #allocation3 [shape = 's32[1]{0}', space=sflag, size = 0x4, scoped, tag = 'scoped memory for tpu_custom_call.1']
    #allocation4 [shape = 's32[1]{0}', space=sflag, size = 0x4, scoped, tag = 'scoped memory for tpu_custom_call.1']
    #allocation5 [shape = 'u8[2048]{0}', space=vmem, size = 0x800, scoped, tag = 'output window, operand 0, single buffered']
    %6 = vsyncpa [#allocation3], 0
    %7 = vsyncpa [#allocation4], 0
    // Predicated region
    $region2: #{tpu_custom_call.1} parent=1 // pred_check
      _
    $region3: #{tpu_custom_call.1} parent=1 // pred_check_branch
      %9 = sbr.rel (0) target = $region5
    $region4: #{tpu_custom_call.1} parent=1 // pred_region
      %s11 = ssub.s32 64, 64
      %12 = vsyncadd [#allocation3], %s11
      %s14 = sshll.u32 [#allocation2], 4
      %s15 = int_to_ptr.vmem [resolvable:$true] %s14
      %17 = dma.hbm_to_vmem [thread:$0]  %s0, 64, %s15, [#allocation3]
    $region5: #{tpu_custom_call.1} parent=1 // pred_fallthru
      _
    // Predicated region
    $region6: #{tpu_custom_call.1} parent=1 // pred_check
      _
    $region7: #{tpu_custom_call.1} parent=1 // pred_check_branch
      %19 = sbr.rel (0) target = $region9
    $region8: #{tpu_custom_call.1} parent=1 // pred_region
      %20 = dma.done [#allocation3], 64
    $region9: #{tpu_custom_call.1} parent=1 // pred_fallthru
      _
    %v21 = vld [vmem:[#allocation2] sm:$0xf]
    %22 = vst [vmem:[#allocation5] sm:$0xf] %v21
    // Predicated region
    $region10: #{tpu_custom_call.1} parent=1 // pred_check
      _
    $region11: #{tpu_custom_call.1} parent=1 // pred_check_branch
      %24 = sbr.rel (0) target = $region13
    $region12: #{tpu_custom_call.1} parent=1 // pred_region
      %s26 = ssub.s32 64, 64
      %27 = vsyncadd [#allocation4], %s26
      %s29 = sshll.u32 [#allocation5], 4
      %s30 = int_to_ptr.vmem [resolvable:$true] %s29
      %32 = dma.vmem_to_hbm [thread:$0]  %s30, 64, %s1, [#allocation4]
    $region13: #{tpu_custom_call.1} parent=1 // pred_fallthru
      _
    // Predicated region
    $region14: #{tpu_custom_call.1} parent=1 // pred_check
      _
    $region15: #{tpu_custom_call.1} parent=1 // pred_check_branch
      %34 = sbr.rel (0) target = $region17
    $region16: #{tpu_custom_call.1} parent=1 // pred_region
      %35 = dma.done [#allocation4], 64
    $region17: #{tpu_custom_call.1} parent=1 // pred_fallthru
      _
    %36 = vsyncpa [#allocation3], 1
    %37 = vsyncpa [#allocation4], 1

</llo_original>
